<compile_context>
chip_gen: v7x
topology: tpu7x:2x2x1
jax: 0.10.0
libtpu: 0.0.40
codegen_flags: <defaults>
</compile_context>

<pallas_src>
import jax
import jax.numpy as jnp
from jax.experimental import pallas as pl
from jax.experimental.pallas import tpu as pltpu


def _fused_mlp_kernel(x_ref, w1_ref, b1_ref, w2_ref, b2_ref, out_ref):
    """Fused MLP on one batch tile: Linear1 -> ReLU -> (Dropout=id, BN folded) -> Linear2.

    Each row of every ref packs GROUP consecutive batch rows (block-diagonal
    weights), so all loads/stores are lane-dense. No in-kernel relayouts.
    """
    x = x_ref[...].astype(jnp.bfloat16)                                # (GT, G*Din)
    h = jnp.dot(x, w1_ref[...], preferred_element_type=jnp.float32)    # (GT, G*F) f32
    h = jnp.maximum(h + b1_ref[...], jnp.float32(0.0))                 # bias + ReLU (f32 VPU)
    # Dropout = identity (eval). BatchNorm folded into w2/b2 by the wrapper.
    y = jnp.dot(h, w2_ref[...], preferred_element_type=jnp.float32)    # (GT, G*E) f32
    out_ref[...] = (y + b2_ref[...]).astype(out_ref.dtype)


def _round_up(n, m):
    return -(-n // m) * m


def _block_diag(w, g):
    """(K, N) -> (g*K, g*N) block-diagonal matrix with g copies of w on the diagonal."""
    if g == 1:
        return w
    K, N = w.shape
    eye = jnp.eye(g, dtype=w.dtype)
    return (eye[:, None, :, None] * w[None, :, None, :]).reshape(g * K, g * N)


def article_embedding_forward(x, params, *, eps=1e-5, batch_tile=4096,
                              out_dtype=jnp.float32):
    """Fused forward. Streams grouped batch tiles through VMEM; weights stay resident."""
    w1, b1, gamma, beta, running_mean, running_var, w2, b2 = params
    B, Din = x.shape
    F = w1.shape[1]
    E = w2.shape[1]

    # --- Fold eval-mode BatchNorm1d into the second Linear (outside the kernel).
    # BN(h) = h * scale + shift  =>  BN(h) @ W2 + b2 = h @ (diag(scale) W2) + (shift @ W2 + b2)
    scale = gamma * jax.lax.rsqrt(running_var + eps)              # (1, F)
    shift = beta - running_mean * scale                           # (1, F)
    w2_f = (w2 * scale.reshape(F, 1)).astype(jnp.float32)         # (F, E) f32 (tiny, resident)
    b2_f = (b2 + shift @ w2).astype(jnp.float32)                  # (1, E)

    # --- Row grouping: pack g batch rows per kernel row so the output last dim
    # is g*E = 128 lanes (and the input last dim is g*Din), i.e. lane-dense.
    g = 128 // E if (E < 128 and 128 % E == 0) else 1

    # Block-diagonal weight replication over the g grouped rows (numerically identical).
    w1_k = _block_diag(w1, g).astype(jnp.bfloat16)                # (g*Din, g*F) bf16 MXU operand
    w2_k = _block_diag(w2_f, g).astype(jnp.float32)               # (g*F,  g*E) f32
    b1_k = jnp.tile(b1.astype(jnp.float32), (1, g))               # (1, g*F)
    b2_k = jnp.tile(b2_f, (1, g))                                 # (1, g*E)

    # Grouped view of x: (B_r/g, g*Din). Free row-major bitcast when B % g == 0;
    # the zero-pad copy is only materialized for a ragged tail.
    B_r = _round_up(max(B, 1), g)
    x_g = x if B_r == B else jnp.pad(x, ((0, B_r - B), (0, 0)))
    x_g = x_g.reshape(B_r // g, g * Din)
    G = B_r // g                                                  # grouped rows available

    # --- Batch tile (in original batch rows). Large tile for HBM-roofline
    # efficiency; shrink for small B so the grid still has >= 2 steps (v7x: 2 TCs).
    row_unit = 8 * g                                              # keeps sublane dim % 8 == 0
    TB = _round_up(max(batch_tile, row_unit), row_unit)
    if B < 2 * TB:
        TB = min(TB, _round_up(max(-(-B // 2), 1), row_unit))
    GT = TB // g                                                  # grouped rows per grid step
    grid = (pl.cdiv(G, GT),)
    out_rows = grid[0] * GT                                       # full coverage -> unmasked stores

    # --- VMEM budget: double-buffered streamed tiles + resident weights + f32 scratch.
    lane = lambda n: _round_up(n, 128)
    vmem_bytes = int(
        2 * GT * lane(g * Din) * 4          # streamed x tiles (f32)
        + 2 * GT * lane(g * E) * 4          # streamed out tiles
        + 2 * (g * Din) * lane(g * F) * 2   # resident w1 (bf16)
        + 2 * (g * F) * lane(g * E) * 4     # resident w2 (f32)
        + GT * lane(g * F) * 4              # h intermediate (f32)
        + GT * lane(g * Din) * 2            # in-kernel bf16 copy of x
        + (4 << 20)                         # biases + headroom
    )
    vmem_bytes = int(min(max(vmem_bytes, 16 << 20), 48 << 20))    # 48 MiB: safe on v7x

    out = pl.pallas_call(
        _fused_mlp_kernel,
        out_shape=jax.ShapeDtypeStruct((out_rows, g * E), out_dtype),
        grid=grid,
        in_specs=[
            # Streamed grouped-x tiles (lane-dense last dim = g*Din).
            pl.BlockSpec((GT, g * Din), lambda i: (i, 0)),
            # Weights / biases: same block every step -> VMEM-resident.
            pl.BlockSpec((g * Din, g * F), lambda i: (0, 0)),
            pl.BlockSpec((1, g * F), lambda i: (0, 0)),
            pl.BlockSpec((g * F, g * E), lambda i: (0, 0)),
            pl.BlockSpec((1, g * E), lambda i: (0, 0)),
        ],
        # Lane-dense output blocks: g*E = 128 -> full unmasked vst, dense DMA.
        out_specs=pl.BlockSpec((GT, g * E), lambda i: (i, 0)),
        compiler_params=pltpu.CompilerParams(
            dimension_semantics=("parallel",),   # shard batch tiles over v7x's 2 TCs
            vmem_limit_bytes=vmem_bytes,
        ),
    )(x_g, w1_k, b1_k, w2_k, b2_k)

    # Ungroup (free row-major reshape) and drop padded / out-of-range rows.
    return out.reshape(-1, E)[:B]


def init_params(key, input_dim, fc_dim, embedding_dim):
    """Deterministic synthetic initialization (shapes match nn.Module.__init__)."""
    k1, k2, k3, k4, k5, k6 = jax.random.split(key, 6)
    # Linear(input_dim, fc_dim): torch weight is (fc_dim, input_dim); store transposed.
    w1 = jax.random.normal(k1, (input_dim, fc_dim), jnp.float32) * 0.05
    b1 = jax.random.normal(k2, (1, fc_dim), jnp.float32) * 0.05
    # BatchNorm1d(fc_dim): affine params + running stats.
    gamma = 1.0 + 0.1 * jax.random.normal(k3, (1, fc_dim), jnp.float32)
    beta = 0.1 * jax.random.normal(k4, (1, fc_dim), jnp.float32)
    running_mean = jnp.zeros((1, fc_dim), jnp.float32)
    running_var = jnp.ones((1, fc_dim), jnp.float32)
    # Linear(fc_dim, embedding_dim): store transposed.
    w2 = jax.random.normal(k5, (fc_dim, embedding_dim), jnp.float32) * 0.05
    b2 = jax.random.normal(k6, (1, embedding_dim), jnp.float32) * 0.05
    return (w1, b1, gamma, beta, running_mean, running_var, w2, b2)


def reference_forward(x, params):
    """Pure-JAX f32 eval-mode reference (un-folded, un-grouped, un-quantized)."""
    w1, b1, gamma, beta, running_mean, running_var, w2, b2 = params
    h = x @ w1 + b1
    h = jnp.maximum(h, 0.0)
    h = (h - running_mean) * jax.lax.rsqrt(running_var + 1e-5) * gamma + beta
    return h @ w2 + b2


if __name__ == "__main__":
    # Small shapes consistent with the module's forward: (batch, input_dim).
    # B=12 deliberately not a multiple of the group size to exercise the ragged path.
    B, INPUT_DIM, FC_DIM, EMBEDDING_DIM = 12, 32, 64, 16

    key = jax.random.PRNGKey(0)
    kx, kp = jax.random.split(key)
    x = jax.random.normal(kx, (B, INPUT_DIM), jnp.float32)
    params = init_params(kp, INPUT_DIM, FC_DIM, EMBEDDING_DIM)

    out = jax.block_until_ready(article_embedding_forward(x, params))
    ref = reference_forward(x, params)

    assert out.shape == (B, EMBEDDING_DIM), out.shape
    # First matmul uses bf16 MXU operands (f32 accumulation) -> bf16-level tolerance.
    max_err = jnp.max(jnp.abs(out - ref))
    assert jnp.allclose(out, ref, atol=2e-2, rtol=2e-2), f"mismatch, max abs err {max_err}"

    print("KERNEL_OK")
</pallas_src>

<mosaic_0001>
module attributes {stable_mosaic.version = 11 : i64} {
  func.func @_fused_mlp_kernel(%arg0: i32, %arg1: memref<8x256xf32, #tpu.memory_space<vmem>>, %arg2: memref<256x512xbf16, #tpu.memory_space<vmem>>, %arg3: memref<1x512xf32, #tpu.memory_space<vmem>>, %arg4: memref<512x128xf32, #tpu.memory_space<vmem>>, %arg5: memref<1x128xf32, #tpu.memory_space<vmem>>, %arg6: memref<8x128xf32, #tpu.memory_space<vmem>>) attributes {dimension_semantics = [#tpu.dimension_semantics<parallel>], iteration_bounds = array<i64: 1>, scalar_prefetch = 0 : i64, scratch_operands = 0 : i64, tpu.core_type = #tpu.core_type<tc>, window_params = [{transform_indices = @transform_0, window_bounds = array<i64: 8, 256>}, {pipeline_mode = #tpu.pipeline_mode<synchronous>, transform_indices = @transform_1, window_bounds = array<i64: 256, 512>}, {pipeline_mode = #tpu.pipeline_mode<synchronous>, transform_indices = @transform_2, window_bounds = array<i64: 1, 512>}, {pipeline_mode = #tpu.pipeline_mode<synchronous>, transform_indices = @transform_3, window_bounds = array<i64: 512, 128>}, {pipeline_mode = #tpu.pipeline_mode<synchronous>, transform_indices = @transform_4, window_bounds = array<i64: 1, 128>}, {transform_indices = @transform_5, window_bounds = array<i64: 8, 128>}]} {
    %c0 = arith.constant 0 : index
    %c0_0 = arith.constant 0 : index
    %0 = vector.load %arg1[%c0, %c0_0] : memref<8x256xf32, #tpu.memory_space<vmem>>, vector<8x256xf32>
    %1 = arith.truncf %0 : vector<8x256xf32> to vector<8x256xbf16>
    %c0_1 = arith.constant 0 : index
    %c0_2 = arith.constant 0 : index
    %2 = vector.load %arg2[%c0_1, %c0_2] : memref<256x512xbf16, #tpu.memory_space<vmem>>, vector<256x512xbf16>
    %cst = arith.constant dense<0.000000e+00> : vector<8x512xf32>
    %3 = tpu.matmul %1, %2, %cst {dimension_numbers = #tpu.dot_dimension_numbers<[1], [0], [0], [1], [0, 0, 1, 1], [], []>} : vector<8x256xbf16>, vector<256x512xbf16>, vector<8x512xf32> -> vector<8x512xf32>
    %c0_3 = arith.constant 0 : index
    %c0_4 = arith.constant 0 : index
    %4 = vector.load %arg3[%c0_3, %c0_4] : memref<1x512xf32, #tpu.memory_space<vmem>>, vector<1x512xf32>
    %5 = vector.broadcast %4 : vector<1x512xf32> to vector<8x512xf32>
    %6 = arith.addf %3, %5 : vector<8x512xf32>
    %cst_5 = arith.constant 0.000000e+00 : f32
    %7 = vector.broadcast %cst_5 : f32 to vector<8x512xf32>
    %8 = arith.maximumf %6, %7 : vector<8x512xf32>
    %c0_6 = arith.constant 0 : index
    %c0_7 = arith.constant 0 : index
    %9 = vector.load %arg4[%c0_6, %c0_7] : memref<512x128xf32, #tpu.memory_space<vmem>>, vector<512x128xf32>
    %cst_8 = arith.constant dense<0.000000e+00> : vector<8x128xf32>
    %10 = tpu.matmul %8, %9, %cst_8 {dimension_numbers = #tpu.dot_dimension_numbers<[1], [0], [0], [1], [0, 0, 1, 1], [], []>} : vector<8x512xf32>, vector<512x128xf32>, vector<8x128xf32> -> vector<8x128xf32>
    %c0_9 = arith.constant 0 : index
    %c0_10 = arith.constant 0 : index
    %11 = vector.load %arg5[%c0_9, %c0_10] : memref<1x128xf32, #tpu.memory_space<vmem>>, vector<1x128xf32>
    %12 = vector.broadcast %11 : vector<1x128xf32> to vector<8x128xf32>
    %13 = arith.addf %10, %12 : vector<8x128xf32>
    %c0_11 = arith.constant 0 : index
    %c0_12 = arith.constant 0 : index
    %14 = vector.load %arg6[%c0_11, %c0_12] : memref<8x128xf32, #tpu.memory_space<vmem>>, vector<8x128xf32>
    tpu.vector_store %arg6[%c0_11, %c0_12], %13 {strides = array<i32>} : memref<8x128xf32, #tpu.memory_space<vmem>>, vector<8x128xf32>,
    return
  }
  func.func @transform_0(%arg0: i32) -> (i32, i32) {
    %c0_i32 = arith.constant 0 : i32
    %c0_i32_0 = arith.constant 0 : i32
    return %arg0, %c0_i32 : i32, i32
  }
  func.func @transform_1(%arg0: i32) -> (i32, i32) {
    %c0_i32 = arith.constant 0 : i32
    %c0_i32_0 = arith.constant 0 : i32
    %c0_i32_1 = arith.constant 0 : i32
    return %c0_i32, %c0_i32_0 : i32, i32
  }
  func.func @transform_2(%arg0: i32) -> (i32, i32) {
    %c0_i32 = arith.constant 0 : i32
    %c0_i32_0 = arith.constant 0 : i32
    %c0_i32_1 = arith.constant 0 : i32
    return %c0_i32, %c0_i32_0 : i32, i32
  }
  func.func @transform_3(%arg0: i32) -> (i32, i32) {
    %c0_i32 = arith.constant 0 : i32
    %c0_i32_0 = arith.constant 0 : i32
    %c0_i32_1 = arith.constant 0 : i32
    return %c0_i32, %c0_i32_0 : i32, i32
  }
  func.func @transform_4(%arg0: i32) -> (i32, i32) {
    %c0_i32 = arith.constant 0 : i32
    %c0_i32_0 = arith.constant 0 : i32
    %c0_i32_1 = arith.constant 0 : i32
    return %c0_i32, %c0_i32_0 : i32, i32
  }
  func.func @transform_5(%arg0: i32) -> (i32, i32) {
    %c0_i32 = arith.constant 0 : i32
    %c0_i32_0 = arith.constant 0 : i32
    return %arg0, %c0_i32 : i32, i32
  }
}

</mosaic_0001>

<llo_original>
// kernel: tpu_custom_call.1
$region0: #{tpu_custom_call.1}
  #allocation0 [shape = 'u32[]', space=smem, size = 0x4, offset = 0x4, fixed_abs, tag = 'smem constant byte address 0x4 - core index']
  #allocation1 [shape = 'u32[144,128]{1,0:T(1,128)}', space=vmem, size = 0x12000, scoped, tag = 'internal scratch']
  %s0 = inlined_call_operand.hbm [shape: f32[2,256], index: 0, kind: input, shape index: {}]
  %s1 = inlined_call_operand.hbm [shape: bf16[256,512], index: 1, kind: input, shape index: {}]
  %s2 = inlined_call_operand.vmem [shape: f32[1,512], index: 2, kind: input, shape index: {}]
  %s3 = inlined_call_operand.hbm [shape: f32[512,128], index: 3, kind: input, shape index: {}]
  %s4 = inlined_call_operand.vmem [shape: f32[1,128], index: 4, kind: input, shape index: {}]
  %s5 = inlined_call_operand.hbm [shape: f32[8,128], index: 5, kind: output, shape index: {}]
  %s6 = sld [smem:[#allocation0]]
  $region42: #{tpu_custom_call.1} parent=0
    _
  %s8 = ssub.s32 1, %s6
  %s9 = scalar_select 0, %s8, %s6
  $region1: #{tpu_custom_call.1} parent=0
    #allocation2 [shape = 'u8[8192]{0}', space=vmem, size = 0x2000, scoped, tag = 'input window, operand 0, single buffered']
    #allocation3 [shape = 's32[1]{0}', space=sflag, size = 0x4, scoped, tag = 'scoped memory for tpu_custom_call.1']
    #allocation4 [shape = 's32[1]{0}', space=sflag, size = 0x4, scoped, tag = 'scoped memory for tpu_custom_call.1']
    #allocation5 [shape = 'u8[262144]{0}', space=vmem, size = 0x40000, scoped, tag = 'input window, operand 1, single buffered']
    #allocation6 [shape = 's32[1]{0}', space=sflag, size = 0x4, scoped, tag = 'scoped memory for tpu_custom_call.1']
    #allocation7 [shape = 'u8[262144]{0}', space=vmem, size = 0x40000, scoped, tag = 'input window, operand 3, single buffered']
    #allocation8 [shape = 'u8[4096]{0}', space=vmem, size = 0x1000, scoped, tag = 'output window, operand 0, single buffered']
    %10 = vsyncpa [#allocation3], 0
    %11 = vsyncpa [#allocation6], 0
    %12 = vsyncpa [#allocation4], 0
    // Predicated region
    $region2: #{tpu_custom_call.1} parent=1 // pred_check
      _
    $region3: #{tpu_custom_call.1} parent=1 // pred_check_branch
      %14 = sbr.rel (0) target = $region5
    $region4: #{tpu_custom_call.1} parent=1 // pred_region
      %s16 = ssub.s32 256, 64
      %17 = vsyncadd [#allocation3], %s16
      %s18 = sshll.u32 [#allocation2], 4
      %s19 = int_to_ptr.vmem [resolvable:$true] %s18
      %24 = dma.hbm_to_vmem [thread:$0]  %s0, 64, %s19, [#allocation3], 64, 64, 4
    $region5: #{tpu_custom_call.1} parent=1 // pred_fallthru
      _
    // Predicated region
    $region6: #{tpu_custom_call.1} parent=1 // pred_check
      _
    $region7: #{tpu_custom_call.1} parent=1 // pred_check_branch
      %26 = sbr.rel (0) target = $region9
    $region8: #{tpu_custom_call.1} parent=1 // pred_region
      %s28 = ssub.s32 8192, 8192
      %29 = vsyncadd [#allocation6], %s28
      %s30 = sshll.u32 [#allocation5], 4
      %s31 = int_to_ptr.vmem [resolvable:$true] %s30
      %36 = dma.hbm_to_vmem [thread:$0]  %s1, 8192, %s31, [#allocation6], 256, 256, 16
    $region9: #{tpu_custom_call.1} parent=1 // pred_fallthru
      _
    // Predicated region
    $region10: #{tpu_custom_call.1} parent=1 // pred_check
      _
    $region11: #{tpu_custom_call.1} parent=1 // pred_check_branch
      %38 = sbr.rel (0) target = $region13
    $region12: #{tpu_custom_call.1} parent=1 // pred_region
      _
    $region13: #{tpu_custom_call.1} parent=1 // pred_fallthru
      _
    // Predicated region
    $region14: #{tpu_custom_call.1} parent=1 // pred_check
      _
    $region15: #{tpu_custom_call.1} parent=1 // pred_check_branch
      %40 = sbr.rel (0) target = $region17
    $region16: #{tpu_custom_call.1} parent=1 // pred_region
      %s42 = ssub.s32 8192, 8192
      %43 = vsyncadd [#allocation6], %s42
      %s44 = sshll.u32 [#allocation7], 4
      %s45 = int_to_ptr.vmem [resolvable:$true] %s44
      %50 = dma.hbm_to_vmem [thread:$0]  %s3, 8192, %s45, [#allocation6], 128, 128, 8
    $region17: #{tpu_custom_call.1} parent=1 // pred_fallthru
      _
    // Predicated region
    $region18: #{tpu_custom_call.1} parent=1 // pred_check
      _
    $region19: #{tpu_custom_call.1} parent=1 // pred_check_branch
      %52 = sbr.rel (0) target = $region21
    $region20: #{tpu_custom_call.1} parent=1 // pred_region
      _
    $region21: #{tpu_custom_call.1} parent=1 // pred_fallthru
      _
    // Predicated region
    $region22: #{tpu_custom_call.1} parent=1 // pred_check
      _
    $region23: #{tpu_custom_call.1} parent=1 // pred_check_branch
      %54 = sbr.rel (0) target = $region25
    $region24: #{tpu_custom_call.1} parent=1 // pred_region
      %55 = dma.done [#allocation3], 256
    $region25: #{tpu_custom_call.1} parent=1 // pred_fallthru
      _
    // Predicated region
    $region26: #{tpu_custom_call.1} parent=1 // pred_check
      _
    $region27: #{tpu_custom_call.1} parent=1 // pred_check_branch
      %57 = sbr.rel (0) target = $region29
    $region28: #{tpu_custom_call.1} parent=1 // pred_region
      %58 = dma.done [#allocation6], 8192
    $region29: #{tpu_custom_call.1} parent=1 // pred_fallthru
      _
    // Predicated region
    $region30: #{tpu_custom_call.1} parent=1 // pred_check
      _
    $region31: #{tpu_custom_call.1} parent=1 // pred_check_branch
      %60 = sbr.rel (0) target = $region33
    $region32: #{tpu_custom_call.1} parent=1 // pred_region
      %61 = dma.done [#allocation6], 8192
    $region33: #{tpu_custom_call.1} parent=1 // pred_fallthru
      _
    %v62 = vld [vmem:[#allocation2] sm:$0xf]
    %v63 = vld [vmem:[#allocation2 + $0x4] sm:$0xf]
    %v64 = vld [vmem:[#allocation2 + $0x8] sm:$0xf]
    %v65 = vld [vmem:[#allocation2 + $0xc] sm:$0xf]
    %v70 = vcombine.low %v62, %v63
    %v71 = vcombine.low %v64, %v65
    %v73 = vunpack.c.l.s4 1983009808
    %v74 = vunpack.c.0.s8 %v73
    %v75 = vlaneseq
    %v76 = vshrl.u32 %v75, 7
    %v77 = vsub.s32 %v74, %v76
    %v78 = vrot.slane %v70, %v77
    %v80 = vunpack.c.l.s4 1983009808
    %v81 = vunpack.c.0.s8 %v80
    %v82 = vlaneseq
    %v83 = vshrl.u32 %v82, 7
    %v84 = vsub.s32 %v81, %v83
    %v85 = vrot.slane %v71, %v84
    %v86 = vcombine.low %v78, %v85
    %v87 = vcombine.high %v78, %v85
    %v90 = vpack.c.bf16 %v86, %v86
    %v91 = vpack.c.bf16 %v87, %v87
    %v92 = vld [vmem:[#allocation5] sm:$0xff]
    %v93 = vld [vmem:[#allocation5 + $0x8] sm:$0xff]
    %v94 = vld [vmem:[#allocation5 + $0x10] sm:$0xff]
    %v95 = vld [vmem:[#allocation5 + $0x18] sm:$0xff]
    %v96 = vld [vmem:[#allocation5 + $0x20] sm:$0xff]
    %v97 = vld [vmem:[#allocation5 + $0x28] sm:$0xff]
    %v98 = vld [vmem:[#allocation5 + $0x30] sm:$0xff]
    %v99 = vld [vmem:[#allocation5 + $0x38] sm:$0xff]
    %v100 = vld [vmem:[#allocation5 + $0x40] sm:$0xff]
    %v101 = vld [vmem:[#allocation5 + $0x48] sm:$0xff]
    %v102 = vld [vmem:[#allocation5 + $0x50] sm:$0xff]
    %v103 = vld [vmem:[#allocation5 + $0x58] sm:$0xff]
    %v104 = vld [vmem:[#allocation5 + $0x60] sm:$0xff]
    %v105 = vld [vmem:[#allocation5 + $0x68] sm:$0xff]
    %v106 = vld [vmem:[#allocation5 + $0x70] sm:$0xff]
    %v107 = vld [vmem:[#allocation5 + $0x78] sm:$0xff]
    %v108 = vld [vmem:[#allocation5 + $0x80] sm:$0xff]
    %v109 = vld [vmem:[#allocation5 + $0x88] sm:$0xff]
    %v110 = vld [vmem:[#allocation5 + $0x90] sm:$0xff]
    %v111 = vld [vmem:[#allocation5 + $0x98] sm:$0xff]
    %v112 = vld [vmem:[#allocation5 + $0xa0] sm:$0xff]
    %v113 = vld [vmem:[#allocation5 + $0xa8] sm:$0xff]
    %v114 = vld [vmem:[#allocation5 + $0xb0] sm:$0xff]
    %v115 = vld [vmem:[#allocation5 + $0xb8] sm:$0xff]
    %v116 = vld [vmem:[#allocation5 + $0xc0] sm:$0xff]
    %v117 = vld [vmem:[#allocation5 + $0xc8] sm:$0xff]
    %v118 = vld [vmem:[#allocation5 + $0xd0] sm:$0xff]
    %v119 = vld [vmem:[#allocation5 + $0xd8] sm:$0xff]
    %v120 = vld [vmem:[#allocation5 + $0xe0] sm:$0xff]
    %v121 = vld [vmem:[#allocation5 + $0xe8] sm:$0xff]
    %v122 = vld [vmem:[#allocation5 + $0xf0] sm:$0xff]
    %v123 = vld [vmem:[#allocation5 + $0xf8] sm:$0xff]
    %v124 = vld [vmem:[#allocation5 + $0x100] sm:$0xff]
    %v125 = vld [vmem:[#allocation5 + $0x108] sm:$0xff]
    %v126 = vld [vmem:[#allocation5 + $0x110] sm:$0xff]
    %v127 = vld [vmem:[#allocation5 + $0x118] sm:$0xff]
    %v128 = vld [vmem:[#allocation5 + $0x120] sm:$0xff]
    %v129 = vld [vmem:[#allocation5 + $0x128] sm:$0xff]
    %v130 = vld [vmem:[#allocation5 + $0x130] sm:$0xff]
    %v131 = vld [vmem:[#allocation5 + $0x138] sm:$0xff]
    %v132 = vld [vmem:[#allocation5 + $0x140] sm:$0xff]
    %v133 = vld [vmem:[#allocation5 + $0x148] sm:$0xff]
    %v134 = vld [vmem:[#allocation5 + $0x150] sm:$0xff]
    %v135 = vld [vmem:[#allocation5 + $0x158] sm:$0xff]
    %v136 = vld [vmem:[#allocation5 + $0x160] sm:$0xff]
    %v137 = vld [vmem:[#allocation5 + $0x168] sm:$0xff]
    %v138 = vld [vmem:[#allocation5 + $0x170] sm:$0xff]
    %v139 = vld [vmem:[#allocation5 + $0x178] sm:$0xff]
    %v140 = vld [vmem:[#allocation5 + $0x180] sm:$0xff]
    %v141 = vld [vmem:[#allocation5 + $0x188] sm:$0xff]
    %v142 = vld [vmem:[#allocation5 + $0x190] sm:$0xff]
    %v143 = vld [vmem:[#allocation5 + $0x198] sm:$0xff]
    %v144 = vld [vmem:[#allocation5 + $0x1a0] sm:$0xff]
    %v145 = vld [vmem:[#allocation5 + $0x1a8] sm:$0xff]
    %v146 = vld [vmem:[#allocation5 + $0x1b0] sm:$0xff]
    %v147 = vld [vmem:[#allocation5 + $0x1b8] sm:$0xff]
    %v148 = vld [vmem:[#allocation5 + $0x1c0] sm:$0xff]
    %v149 = vld [vmem:[#allocation5 + $0x1c8] sm:$0xff]
    %v150 = vld [vmem:[#allocation5 + $0x1d0] sm:$0xff]
    %v151 = vld [vmem:[#allocation5 + $0x1d8] sm:$0xff]
    %v152 = vld [vmem:[#allocation5 + $0x1e0] sm:$0xff]
    %v153 = vld [vmem:[#allocation5 + $0x1e8] sm:$0xff]
    %v154 = vld [vmem:[#allocation5 + $0x1f0] sm:$0xff]
    %v155 = vld [vmem:[#allocation5 + $0x1f8] sm:$0xff]
    %v156 = vld [vmem:[%s2] sm:$0xf]
    %v158 = vlaneseq
    %v159 = vshrl.u32 %v158, 7
    %v160 = vsub.s32 0, %v159
    %v161 = vrot.slane %v156, %v160
    %v162 = vlaneseq
    %v163 = vshrl.u32 %v162, 7
    %v164 = vsub.s32 1, %v163
    %v165 = vrot.slane %v156, %v164
    %v166 = vlaneseq
    %v167 = vshrl.u32 %v166, 7
    %v168 = vsub.s32 2, %v167
    %v169 = vrot.slane %v156, %v168
    %v170 = vlaneseq
    %v171 = vshrl.u32 %v170, 7
    %v172 = vsub.s32 3, %v171
    %v173 = vrot.slane %v156, %v172
    %v242 = vunpack.c.l.b16 %v92
    %v243 = vunpack.c.h.b16 %v92
    %v244 = vunpack.c.l.b16 %v93
    %v245 = vunpack.c.h.b16 %v93
    %v246 = vunpack.c.l.b16 %v94
    %v247 = vunpack.c.h.b16 %v94
    %v248 = vunpack.c.l.b16 %v95
    %v249 = vunpack.c.h.b16 %v95
    %v250 = vunpack.c.l.b16 %v96
    %v251 = vunpack.c.h.b16 %v96
    %v252 = vunpack.c.l.b16 %v97
    %v253 = vunpack.c.h.b16 %v97
    %v254 = vunpack.c.l.b16 %v98
    %v255 = vunpack.c.h.b16 %v98
    %v256 = vunpack.c.l.b16 %v99
    %v257 = vunpack.c.h.b16 %v99
    %v258 = vunpack.c.l.b16 %v100
    %v259 = vunpack.c.h.b16 %v100
    %v260 = vunpack.c.l.b16 %v101
    %v261 = vunpack.c.h.b16 %v101
    %v262 = vunpack.c.l.b16 %v102
    %v263 = vunpack.c.h.b16 %v102
    %v264 = vunpack.c.l.b16 %v103
    %v265 = vunpack.c.h.b16 %v103
    %v266 = vunpack.c.l.b16 %v104
    %v267 = vunpack.c.h.b16 %v104
    %v268 = vunpack.c.l.b16 %v105
    %v269 = vunpack.c.h.b16 %v105
    %v270 = vunpack.c.l.b16 %v106
    %v271 = vunpack.c.h.b16 %v106
    %v272 = vunpack.c.l.b16 %v107
    %v273 = vunpack.c.h.b16 %v107
    %v274 = vunpack.c.l.b16 %v108
    %v275 = vunpack.c.h.b16 %v108
    %v276 = vunpack.c.l.b16 %v109
    %v277 = vunpack.c.h.b16 %v109
    %v278 = vunpack.c.l.b16 %v110
    %v279 = vunpack.c.h.b16 %v110
    %v280 = vunpack.c.l.b16 %v111
    %v281 = vunpack.c.h.b16 %v111
    %v282 = vunpack.c.l.b16 %v112
    %v283 = vunpack.c.h.b16 %v112
    %v284 = vunpack.c.l.b16 %v113
    %v285 = vunpack.c.h.b16 %v113
    %v286 = vunpack.c.l.b16 %v114
    %v287 = vunpack.c.h.b16 %v114
    %v288 = vunpack.c.l.b16 %v115
    %v289 = vunpack.c.h.b16 %v115
    %v290 = vunpack.c.l.b16 %v116
    %v291 = vunpack.c.h.b16 %v116
    %v292 = vunpack.c.l.b16 %v117
    %v293 = vunpack.c.h.b16 %v117
    %v294 = vunpack.c.l.b16 %v118
    %v295 = vunpack.c.h.b16 %v118
    %v296 = vunpack.c.l.b16 %v119
    %v297 = vunpack.c.h.b16 %v119
    %v298 = vunpack.c.l.b16 %v120
    %v299 = vunpack.c.h.b16 %v120
    %v300 = vunpack.c.l.b16 %v121
    %v301 = vunpack.c.h.b16 %v121
    %v302 = vunpack.c.l.b16 %v122
    %v303 = vunpack.c.h.b16 %v122
    %v304 = vunpack.c.l.b16 %v123
    %v305 = vunpack.c.h.b16 %v123
    %v306 = vunpack.c.l.b16 %v124
    %v307 = vunpack.c.h.b16 %v124
    %v308 = vunpack.c.l.b16 %v125
    %v309 = vunpack.c.h.b16 %v125
    %v310 = vunpack.c.l.b16 %v126
    %v311 = vunpack.c.h.b16 %v126
    %v312 = vunpack.c.l.b16 %v127
    %v313 = vunpack.c.h.b16 %v127
    %v314 = vunpack.c.l.b16 %v128
    %v315 = vunpack.c.h.b16 %v128
    %v316 = vunpack.c.l.b16 %v129
    %v317 = vunpack.c.h.b16 %v129
    %v318 = vunpack.c.l.b16 %v130
    %v319 = vunpack.c.h.b16 %v130
    %v320 = vunpack.c.l.b16 %v131
    %v321 = vunpack.c.h.b16 %v131
    %v322 = vunpack.c.l.b16 %v132
    %v323 = vunpack.c.h.b16 %v132
    %v324 = vunpack.c.l.b16 %v133
    %v325 = vunpack.c.h.b16 %v133
    %v326 = vunpack.c.l.b16 %v134
    %v327 = vunpack.c.h.b16 %v134
    %v328 = vunpack.c.l.b16 %v135
    %v329 = vunpack.c.h.b16 %v135
    %v330 = vunpack.c.l.b16 %v136
    %v331 = vunpack.c.h.b16 %v136
    %v332 = vunpack.c.l.b16 %v137
    %v333 = vunpack.c.h.b16 %v137
    %v334 = vunpack.c.l.b16 %v138
    %v335 = vunpack.c.h.b16 %v138
    %v336 = vunpack.c.l.b16 %v139
    %v337 = vunpack.c.h.b16 %v139
    %v338 = vunpack.c.l.b16 %v140
    %v339 = vunpack.c.h.b16 %v140
    %v340 = vunpack.c.l.b16 %v141
    %v341 = vunpack.c.h.b16 %v141
    %v342 = vunpack.c.l.b16 %v142
    %v343 = vunpack.c.h.b16 %v142
    %v344 = vunpack.c.l.b16 %v143
    %v345 = vunpack.c.h.b16 %v143
    %v346 = vunpack.c.l.b16 %v144
    %v347 = vunpack.c.h.b16 %v144
    %v348 = vunpack.c.l.b16 %v145
    %v349 = vunpack.c.h.b16 %v145
    %v350 = vunpack.c.l.b16 %v146
    %v351 = vunpack.c.h.b16 %v146
    %v352 = vunpack.c.l.b16 %v147
    %v353 = vunpack.c.h.b16 %v147
    %v354 = vunpack.c.l.b16 %v148
    %v355 = vunpack.c.h.b16 %v148
    %v356 = vunpack.c.l.b16 %v149
    %v357 = vunpack.c.h.b16 %v149
    %v358 = vunpack.c.l.b16 %v150
    %v359 = vunpack.c.h.b16 %v150
    %v360 = vunpack.c.l.b16 %v151
    %v361 = vunpack.c.h.b16 %v151
    %v362 = vunpack.c.l.b16 %v152
    %v363 = vunpack.c.h.b16 %v152
    %v364 = vunpack.c.l.b16 %v153
    %v365 = vunpack.c.h.b16 %v153
    %v366 = vunpack.c.l.b16 %v154
    %v367 = vunpack.c.h.b16 %v154
    %v368 = vunpack.c.l.b16 %v155
    %v369 = vunpack.c.h.b16 %v155
    %v370 = vpack.c.b16 %v246, %v242
    %v371 = vpack.c.b16 %v247, %v243
    %v372 = vpack.c.b16 %v248, %v244
    %v373 = vpack.c.b16 %v249, %v245
    %v374 = vpack.c.b16 %v254, %v250
    %v375 = vpack.c.b16 %v255, %v251
    %v376 = vpack.c.b16 %v256, %v252
    %v377 = vpack.c.b16 %v257, %v253
    %v378 = vpack.c.b16 %v262, %v258
    %v379 = vpack.c.b16 %v263, %v259
    %v380 = vpack.c.b16 %v264, %v260
    %v381 = vpack.c.b16 %v265, %v261
    %v382 = vpack.c.b16 %v270, %v266
    %v383 = vpack.c.b16 %v271, %v267
    %v384 = vpack.c.b16 %v272, %v268
    %v385 = vpack.c.b16 %v273, %v269
    %v386 = vpack.c.b16 %v278, %v274
    %v387 = vpack.c.b16 %v279, %v275
    %v388 = vpack.c.b16 %v280, %v276
    %v389 = vpack.c.b16 %v281, %v277
    %v390 = vpack.c.b16 %v286, %v282
    %v391 = vpack.c.b16 %v287, %v283
    %v392 = vpack.c.b16 %v288, %v284
    %v393 = vpack.c.b16 %v289, %v285
    %v394 = vpack.c.b16 %v294, %v290
    %v395 = vpack.c.b16 %v295, %v291
    %v396 = vpack.c.b16 %v296, %v292
    %v397 = vpack.c.b16 %v297, %v293
    %v398 = vpack.c.b16 %v302, %v298
    %v399 = vpack.c.b16 %v303, %v299
    %v400 = vpack.c.b16 %v304, %v300
    %v401 = vpack.c.b16 %v305, %v301
    %v402 = vpack.c.b16 %v310, %v306
    %v403 = vpack.c.b16 %v311, %v307
    %v404 = vpack.c.b16 %v312, %v308
    %v405 = vpack.c.b16 %v313, %v309
    %v406 = vpack.c.b16 %v318, %v314
    %v407 = vpack.c.b16 %v319, %v315
    %v408 = vpack.c.b16 %v320, %v316
    %v409 = vpack.c.b16 %v321, %v317
    %v410 = vpack.c.b16 %v326, %v322
    %v411 = vpack.c.b16 %v327, %v323
    %v412 = vpack.c.b16 %v328, %v324
    %v413 = vpack.c.b16 %v329, %v325
    %v414 = vpack.c.b16 %v334, %v330
    %v415 = vpack.c.b16 %v335, %v331
    %v416 = vpack.c.b16 %v336, %v332
    %v417 = vpack.c.b16 %v337, %v333
    %v418 = vpack.c.b16 %v342, %v338
    %v419 = vpack.c.b16 %v343, %v339
    %v420 = vpack.c.b16 %v344, %v340
    %v421 = vpack.c.b16 %v345, %v341
    %v422 = vpack.c.b16 %v350, %v346
    %v423 = vpack.c.b16 %v351, %v347
    %v424 = vpack.c.b16 %v352, %v348
    %v425 = vpack.c.b16 %v353, %v349
    %v426 = vpack.c.b16 %v358, %v354
    %v427 = vpack.c.b16 %v359, %v355
    %v428 = vpack.c.b16 %v360, %v356
    %v429 = vpack.c.b16 %v361, %v357
    %v430 = vpack.c.b16 %v366, %v362
    %v431 = vpack.c.b16 %v367, %v363
    %v432 = vpack.c.b16 %v368, %v364
    %v433 = vpack.c.b16 %v369, %v365
    %498 = vmatprep.subr.bf16.mxu0 %v371
    %499 = vmatpush1.bf16.msra.mxu0 %v370
    %500 = vmatprep.subr.bf16.mxu0 %v375
    %501 = vmatpush1.bf16.msra.mxu0 %v374
    %502 = vmatprep.subr.bf16.mxu0 %v379
    %503 = vmatpush1.bf16.msra.mxu0 %v378
    %504 = vmatprep.subr.bf16.mxu0 %v383
    %505 = vmatpush1.bf16.msra.mxu0 %v382
    %506 = vmatprep.subr.bf16.mxu0 %v387
    %507 = vmatpush1.bf16.msra.mxu0 %v386
    %508 = vmatprep.subr.bf16.mxu0 %v391
    %509 = vmatpush1.bf16.msra.mxu0 %v390
    %510 = vmatprep.subr.bf16.mxu0 %v395
    %511 = vmatpush1.bf16.msra.mxu0 %v394
    %512 = vmatprep.subr.bf16.mxu0 %v399
    %513 = vmatpush1.bf16.msra.mxu0 %v398
    %514 = vmatprep.subr.bf16.mxu0 %v403
    %515 = vmatpush1.bf16.msra.mxu0 %v402
    %516 = vmatprep.subr.bf16.mxu0 %v407
    %517 = vmatpush1.bf16.msra.mxu0 %v406
    %518 = vmatprep.subr.bf16.mxu0 %v411
    %519 = vmatpush1.bf16.msra.mxu0 %v410
    %520 = vmatprep.subr.bf16.mxu0 %v415
    %521 = vmatpush1.bf16.msra.mxu0 %v414
    %522 = vmatprep.subr.bf16.mxu0 %v419
    %523 = vmatpush1.bf16.msra.mxu0 %v418
    %524 = vmatprep.subr.bf16.mxu0 %v423
    %525 = vmatpush1.bf16.msra.mxu0 %v422
    %526 = vmatprep.subr.bf16.mxu0 %v427
    %527 = vmatpush1.bf16.msra.mxu0 %v426
    %528 = vmatprep.subr.bf16.mxu0 %v431
    %529 = vmatpush1.bf16.msra.mxu0 %v430
    %530 = vmatprep.mubr.bf16.mxu0 %v91
    %531 = vmatmul.mubr.bf16.gmra.mrb[0].mxu0 %v90
    %v532 = vpop.f32.mrb[0].mxu0
    %v533 = vadd.f32 %v161, %v532
    %v534 = vpop.f32.mrb[0].mxu0
    %v535 = vadd.f32 %v165, %v534
    %v536 = vpop.f32.mrb[0].mxu0
    %v537 = vpop.f32.mrb[0].mxu0
    %538 = vdwg.mxu0
    %539 = vmatprep.subr.bf16.mxu0 %v373
    %540 = vmatpush1.bf16.msra.mxu0 %v372
    %541 = vmatprep.subr.bf16.mxu0 %v377
    %542 = vmatpush1.bf16.msra.mxu0 %v376
    %543 = vmatprep.subr.bf16.mxu0 %v381
    %544 = vmatpush1.bf16.msra.mxu0 %v380
    %545 = vmatprep.subr.bf16.mxu0 %v385
    %546 = vmatpush1.bf16.msra.mxu0 %v384
    %547 = vmatprep.subr.bf16.mxu0 %v389
    %548 = vmatpush1.bf16.msra.mxu0 %v388
    %549 = vmatprep.subr.bf16.mxu0 %v393
    %550 = vmatpush1.bf16.msra.mxu0 %v392
    %551 = vmatprep.subr.bf16.mxu0 %v397
    %552 = vmatpush1.bf16.msra.mxu0 %v396
    %553 = vmatprep.subr.bf16.mxu0 %v401
    %554 = vmatpush1.bf16.msra.mxu0 %v400
    %555 = vmatprep.subr.bf16.mxu0 %v405
    %556 = vmatpush1.bf16.msra.mxu0 %v404
    %557 = vmatprep.subr.bf16.mxu0 %v409
    %558 = vmatpush1.bf16.msra.mxu0 %v408
    %559 = vmatprep.subr.bf16.mxu0 %v413
    %560 = vmatpush1.bf16.msra.mxu0 %v412
    %561 = vmatprep.subr.bf16.mxu0 %v417
    %562 = vmatpush1.bf16.msra.mxu0 %v416
    %563 = vmatprep.subr.bf16.mxu0 %v421
    %564 = vmatpush1.bf16.msra.mxu0 %v420
    %565 = vmatprep.subr.bf16.mxu0 %v425
    %566 = vmatpush1.bf16.msra.mxu0 %v424
    %567 = vmatprep.subr.bf16.mxu0 %v429
    %568 = vmatpush1.bf16.msra.mxu0 %v428
    %569 = vmatprep.subr.bf16.mxu0 %v433
    %570 = vmatpush1.bf16.msra.mxu0 %v432
    %571 = vmatprep.mubr.bf16.mxu0 %v91
    %572 = vmatmul.mubr.bf16.gmra.mrb[0].mxu0 %v90
    %v573 = vpop.f32.mrb[0].mxu0
    %v574 = vadd.f32 %v169, %v573
    %v575 = vpop.f32.mrb[0].mxu0
    %v576 = vadd.f32 %v173, %v575
    %v577 = vpop.f32.mrb[0].mxu0
    %v578 = vpop.f32.mrb[0].mxu0
    %579 = vdwg.mxu0
    %v580 = vmax.f32 %v533, 0.0
    %v581 = vmax.f32 %v535, 0.0
    %v582 = vmax.f32 %v574, 0.0
    %v583 = vmax.f32 %v576, 0.0
    %v584 = vld [vmem:[#allocation7] sm:$0xff]
    %v585 = vld [vmem:[#allocation7 + $0x8] sm:$0xff]
    %v586 = vld [vmem:[#allocation7 + $0x10] sm:$0xff]
    %v587 = vld [vmem:[#allocation7 + $0x18] sm:$0xff]
    %v588 = vld [vmem:[#allocation7 + $0x20] sm:$0xff]
    %v589 = vld [vmem:[#allocation7 + $0x28] sm:$0xff]
    %v590 = vld [vmem:[#allocation7 + $0x30] sm:$0xff]
    %v591 = vld [vmem:[#allocation7 + $0x38] sm:$0xff]
    %v592 = vld [vmem:[#allocation7 + $0x40] sm:$0xff]
    %v593 = vld [vmem:[#allocation7 + $0x48] sm:$0xff]
    %v594 = vld [vmem:[#allocation7 + $0x50] sm:$0xff]
    %v595 = vld [vmem:[#allocation7 + $0x58] sm:$0xff]
    %v596 = vld [vmem:[#allocation7 + $0x60] sm:$0xff]
    %v597 = vld [vmem:[#allocation7 + $0x68] sm:$0xff]
    %v598 = vld [vmem:[#allocation7 + $0x70] sm:$0xff]
    %v599 = vld [vmem:[#allocation7 + $0x78] sm:$0xff]
    %v600 = vld [vmem:[#allocation7 + $0x80] sm:$0xff]
    %v601 = vld [vmem:[#allocation7 + $0x88] sm:$0xff]
    %v602 = vld [vmem:[#allocation7 + $0x90] sm:$0xff]
    %v603 = vld [vmem:[#allocation7 + $0x98] sm:$0xff]
    %v604 = vld [vmem:[#allocation7 + $0xa0] sm:$0xff]
    %v605 = vld [vmem:[#allocation7 + $0xa8] sm:$0xff]
    %v606 = vld [vmem:[#allocation7 + $0xb0] sm:$0xff]
    %v607 = vld [vmem:[#allocation7 + $0xb8] sm:$0xff]
    %v608 = vld [vmem:[#allocation7 + $0xc0] sm:$0xff]
    %v609 = vld [vmem:[#allocation7 + $0xc8] sm:$0xff]
    %v610 = vld [vmem:[#allocation7 + $0xd0] sm:$0xff]
    %v611 = vld [vmem:[#allocation7 + $0xd8] sm:$0xff]
    %v612 = vld [vmem:[#allocation7 + $0xe0] sm:$0xff]
    %v613 = vld [vmem:[#allocation7 + $0xe8] sm:$0xff]
    %v614 = vld [vmem:[#allocation7 + $0xf0] sm:$0xff]
    %v615 = vld [vmem:[#allocation7 + $0xf8] sm:$0xff]
    %v616 = vld [vmem:[#allocation7 + $0x100] sm:$0xff]
    %v617 = vld [vmem:[#allocation7 + $0x108] sm:$0xff]
    %v618 = vld [vmem:[#allocation7 + $0x110] sm:$0xff]
    %v619 = vld [vmem:[#allocation7 + $0x118] sm:$0xff]
    %v620 = vld [vmem:[#allocation7 + $0x120] sm:$0xff]
    %v621 = vld [vmem:[#allocation7 + $0x128] sm:$0xff]
    %v622 = vld [vmem:[#allocation7 + $0x130] sm:$0xff]
    %v623 = vld [vmem:[#allocation7 + $0x138] sm:$0xff]
    %v624 = vld [vmem:[#allocation7 + $0x140] sm:$0xff]
    %v625 = vld [vmem:[#allocation7 + $0x148] sm:$0xff]
    %v626 = vld [vmem:[#allocation7 + $0x150] sm:$0xff]
    %v627 = vld [vmem:[#allocation7 + $0x158] sm:$0xff]
    %v628 = vld [vmem:[#allocation7 + $0x160] sm:$0xff]
    %v629 = vld [vmem:[#allocation7 + $0x168] sm:$0xff]
    %v630 = vld [vmem:[#allocation7 + $0x170] sm:$0xff]
    %v631 = vld [vmem:[#allocation7 + $0x178] sm:$0xff]
    %v632 = vld [vmem:[#allocation7 + $0x180] sm:$0xff]
    %v633 = vld [vmem:[#allocation7 + $0x188] sm:$0xff]
    %v634 = vld [vmem:[#allocation7 + $0x190] sm:$0xff]
    %v635 = vld [vmem:[#allocation7 + $0x198] sm:$0xff]
    %v636 = vld [vmem:[#allocation7 + $0x1a0] sm:$0xff]
    %v637 = vld [vmem:[#allocation7 + $0x1a8] sm:$0xff]
    %v638 = vld [vmem:[#allocation7 + $0x1b0] sm:$0xff]
    %v639 = vld [vmem:[#allocation7 + $0x1b8] sm:$0xff]
    %v640 = vld [vmem:[#allocation7 + $0x1c0] sm:$0xff]
    %v641 = vld [vmem:[#allocation7 + $0x1c8] sm:$0xff]
    %v642 = vld [vmem:[#allocation7 + $0x1d0] sm:$0xff]
    %v643 = vld [vmem:[#allocation7 + $0x1d8] sm:$0xff]
    %v644 = vld [vmem:[#allocation7 + $0x1e0] sm:$0xff]
    %v645 = vld [vmem:[#allocation7 + $0x1e8] sm:$0xff]
    %v646 = vld [vmem:[#allocation7 + $0x1f0] sm:$0xff]
    %v647 = vld [vmem:[#allocation7 + $0x1f8] sm:$0xff]
    %v648 = vld [vmem:[%s4] sm:$0x1]
    %v650 = vlaneseq
    %v651 = vshrl.u32 %v650, 7
    %v652 = vsub.s32 0, %v651
    %v653 = vrot.slane %v648, %v652
    %655 = vmatprep.subr.mxu0 0.0
    %656 = vmatpush1.msra.mxu0 %v584
    %657 = vmatprep.subr.mxu0 0.0
    %658 = vmatpush1.msra.mxu0 %v585
    %659 = vmatprep.subr.mxu0 0.0
    %660 = vmatpush1.msra.mxu0 %v586
    %661 = vmatprep.subr.mxu0 0.0
    %662 = vmatpush1.msra.mxu0 %v587
    %663 = vmatprep.subr.mxu0 0.0
    %664 = vmatpush1.msra.mxu0 %v588
    %665 = vmatprep.subr.mxu0 0.0
    %666 = vmatpush1.msra.mxu0 %v589
    %667 = vmatprep.subr.mxu0 0.0
    %668 = vmatpush1.msra.mxu0 %v590
    %669 = vmatprep.subr.mxu0 0.0
    %670 = vmatpush1.msra.mxu0 %v591
    %671 = vmatprep.subr.mxu0 0.0
    %672 = vmatpush1.msra.mxu0 %v592
    %673 = vmatprep.subr.mxu0 0.0
    %674 = vmatpush1.msra.mxu0 %v593
    %675 = vmatprep.subr.mxu0 0.0
    %676 = vmatpush1.msra.mxu0 %v594
    %677 = vmatprep.subr.mxu0 0.0
    %678 = vmatpush1.msra.mxu0 %v595
    %679 = vmatprep.subr.mxu0 0.0
    %680 = vmatpush1.msra.mxu0 %v596
    %681 = vmatprep.subr.mxu0 0.0
    %682 = vmatpush1.msra.mxu0 %v597
    %683 = vmatprep.subr.mxu0 0.0
    %684 = vmatpush1.msra.mxu0 %v598
    %685 = vmatprep.subr.mxu0 0.0
    %686 = vmatpush1.msra.mxu0 %v599
    %687 = vmatprep.subr.mxu0 0.0
    %688 = vmatpush1.msra.mxu0 %v600
    %689 = vmatprep.subr.mxu0 0.0
    %690 = vmatpush1.msra.mxu0 %v601
    %691 = vmatprep.subr.mxu0 0.0
    %692 = vmatpush1.msra.mxu0 %v602
    %693 = vmatprep.subr.mxu0 0.0
    %694 = vmatpush1.msra.mxu0 %v603
    %695 = vmatprep.subr.mxu0 0.0
    %696 = vmatpush1.msra.mxu0 %v604
    %697 = vmatprep.subr.mxu0 0.0
    %698 = vmatpush1.msra.mxu0 %v605
    %699 = vmatprep.subr.mxu0 0.0
    %700 = vmatpush1.msra.mxu0 %v606
    %701 = vmatprep.subr.mxu0 0.0
    %702 = vmatpush1.msra.mxu0 %v607
    %703 = vmatprep.subr.mxu0 0.0
    %704 = vmatpush1.msra.mxu0 %v608
    %705 = vmatprep.subr.mxu0 0.0
    %706 = vmatpush1.msra.mxu0 %v609
    %707 = vmatprep.subr.mxu0 0.0
    %708 = vmatpush1.msra.mxu0 %v610
    %709 = vmatprep.subr.mxu0 0.0
    %710 = vmatpush1.msra.mxu0 %v611
    %711 = vmatprep.subr.mxu0 0.0
    %712 = vmatpush1.msra.mxu0 %v612
    %713 = vmatprep.subr.mxu0 0.0
    %714 = vmatpush1.msra.mxu0 %v613
    %715 = vmatprep.subr.mxu0 0.0
    %716 = vmatpush1.msra.mxu0 %v614
    %717 = vmatprep.subr.mxu0 0.0
    %718 = vmatpush1.msra.mxu0 %v615
    %719 = vmatprep.mubr.f32.mxu0 %v581
    %720 = vmatmul.mubr.f32.gmra.mrb[0].mxu0 %v580
    %v721 = vpop.f32.mrb[0].mxu0
    %v722 = vadd.f32 %v653, %v721
    %v723 = vpop.f32.mrb[0].mxu0
    %724 = vdwg.mxu0
    %725 = vmatprep.subr.mxu0 0.0
    %726 = vmatpush1.msra.mxu0 %v616
    %727 = vmatprep.subr.mxu0 0.0
    %728 = vmatpush1.msra.mxu0 %v617
    %729 = vmatprep.subr.mxu0 0.0
    %730 = vmatpush1.msra.mxu0 %v618
    %731 = vmatprep.subr.mxu0 0.0
    %732 = vmatpush1.msra.mxu0 %v619
    %733 = vmatprep.subr.mxu0 0.0
    %734 = vmatpush1.msra.mxu0 %v620
    %735 = vmatprep.subr.mxu0 0.0
    %736 = vmatpush1.msra.mxu0 %v621
    %737 = vmatprep.subr.mxu0 0.0
    %738 = vmatpush1.msra.mxu0 %v622
    %739 = vmatprep.subr.mxu0 0.0
    %740 = vmatpush1.msra.mxu0 %v623
    %741 = vmatprep.subr.mxu0 0.0
    %742 = vmatpush1.msra.mxu0 %v624
    %743 = vmatprep.subr.mxu0 0.0
    %744 = vmatpush1.msra.mxu0 %v625
    %745 = vmatprep.subr.mxu0 0.0
    %746 = vmatpush1.msra.mxu0 %v626
    %747 = vmatprep.subr.mxu0 0.0
    %748 = vmatpush1.msra.mxu0 %v627
    %749 = vmatprep.subr.mxu0 0.0
    %750 = vmatpush1.msra.mxu0 %v628
    %751 = vmatprep.subr.mxu0 0.0
    %752 = vmatpush1.msra.mxu0 %v629
    %753 = vmatprep.subr.mxu0 0.0
    %754 = vmatpush1.msra.mxu0 %v630
    %755 = vmatprep.subr.mxu0 0.0
    %756 = vmatpush1.msra.mxu0 %v631
    %757 = vmatprep.subr.mxu0 0.0
    %758 = vmatpush1.msra.mxu0 %v632
    %759 = vmatprep.subr.mxu0 0.0
    %760 = vmatpush1.msra.mxu0 %v633
    %761 = vmatprep.subr.mxu0 0.0
    %762 = vmatpush1.msra.mxu0 %v634
    %763 = vmatprep.subr.mxu0 0.0
    %764 = vmatpush1.msra.mxu0 %v635
    %765 = vmatprep.subr.mxu0 0.0
    %766 = vmatpush1.msra.mxu0 %v636
    %767 = vmatprep.subr.mxu0 0.0
    %768 = vmatpush1.msra.mxu0 %v637
    %769 = vmatprep.subr.mxu0 0.0
    %770 = vmatpush1.msra.mxu0 %v638
    %771 = vmatprep.subr.mxu0 0.0
    %772 = vmatpush1.msra.mxu0 %v639
    %773 = vmatprep.subr.mxu0 0.0
    %774 = vmatpush1.msra.mxu0 %v640
    %775 = vmatprep.subr.mxu0 0.0
    %776 = vmatpush1.msra.mxu0 %v641
    %777 = vmatprep.subr.mxu0 0.0
    %778 = vmatpush1.msra.mxu0 %v642
    %779 = vmatprep.subr.mxu0 0.0
    %780 = vmatpush1.msra.mxu0 %v643
    %781 = vmatprep.subr.mxu0 0.0
    %782 = vmatpush1.msra.mxu0 %v644
    %783 = vmatprep.subr.mxu0 0.0
    %784 = vmatpush1.msra.mxu0 %v645
    %785 = vmatprep.subr.mxu0 0.0
    %786 = vmatpush1.msra.mxu0 %v646
    %787 = vmatprep.subr.mxu0 0.0
    %788 = vmatpush1.msra.mxu0 %v647
    %789 = vmatprep.mubr.f32.mxu0 %v583
    %790 = vmatmul.mubr.f32.gmra.mrb[0].mxu0 %v582
    %v791 = vpop.f32.mrb[0].mxu0
    %v792 = vadd.f32 %v722, %v791
    %v793 = vpop.f32.mrb[0].mxu0
    %794 = vdwg.mxu0
    %795 = vst [vmem:[#allocation8] sm:$0xff] %v792
    // Predicated region
    $region34: #{tpu_custom_call.1} parent=1 // pred_check
      _
    $region35: #{tpu_custom_call.1} parent=1 // pred_check_branch
      %797 = sbr.rel (0) target = $region37
    $region36: #{tpu_custom_call.1} parent=1 // pred_region
      %s799 = ssub.s32 128, 128
      %800 = vsyncadd [#allocation4], %s799
      %s802 = sshll.u32 [#allocation8], 4
      %s803 = int_to_ptr.vmem [resolvable:$true] %s802
      %805 = dma.vmem_to_hbm [thread:$0]  %s803, 128, %s5, [#allocation4]
    $region37: #{tpu_custom_call.1} parent=1 // pred_fallthru
      _
    // Predicated region
    $region38: #{tpu_custom_call.1} parent=1 // pred_check
      _
    $region39: #{tpu_custom_call.1} parent=1 // pred_check_branch
      %807 = sbr.rel (0) target = $region41
    $region40: #{tpu_custom_call.1} parent=1 // pred_region
      %808 = dma.done [#allocation4], 128
    $region41: #{tpu_custom_call.1} parent=1 // pred_fallthru
      _
    %809 = vsyncpa [#allocation3], 1
    %810 = vsyncpa [#allocation6], 1
    %811 = vsyncpa [#allocation4], 1

</llo_original>
